<compile_context>
chip_gen: v7x
topology: tpu7x:2x2x1
jax: 0.10.0
libtpu: 0.0.40
codegen_flags: <defaults>
</compile_context>

<pallas_src>
import functools

import jax
import jax.numpy as jnp
from jax.experimental import pallas as pl
from jax.experimental.pallas import tpu as pltpu


# ----------------------------------------------------------------------------
# small tiling helpers (shared by kernels and parameter preparation)
# ----------------------------------------------------------------------------
def _round_up(n, m):
    return ((n + m - 1) // m) * m


def _tile_multiple_of_128(n, cap):
    best = None
    t = 128
    while t <= min(n, cap):
        if n % t == 0:
            best = t
        t += 128
    return best


def _channel_tile(c):
    t = _tile_multiple_of_128(c, 512)
    return c if t is None else t


def _row_tile(m, cap=256):
    if m <= cap:
        return m
    best = m
    for t in range(8, cap + 1, 8):
        if m % t == 0:
            best = t
    return best if best <= cap else m


# ----------------------------------------------------------------------------
# Kernel 1: tiled (relu_in ->) bf16 matmul + bias (-> relu_out), f32 accumulator
# Used for every 1x1 conv (NHWC 1x1 conv == matmul over channels).
# ----------------------------------------------------------------------------
def _matmul_bias_kernel(x_ref, w_ref, b_ref, o_ref, acc_ref, *, relu_in, relu_out):
    @pl.when(pl.program_id(2) == 0)
    def _init():
        acc_ref[...] = jnp.zeros_like(acc_ref)

    xv = x_ref[...]
    if relu_in:
        xv = jnp.maximum(xv, 0.0)
    acc_ref[...] += jnp.dot(xv.astype(w_ref.dtype), w_ref[...],
                            preferred_element_type=jnp.float32)

    @pl.when(pl.program_id(2) == pl.num_programs(2) - 1)
    def _finish():
        y = acc_ref[...] + b_ref[...].astype(jnp.float32)
        if relu_out:
            y = jnp.maximum(y, 0.0)
        o_ref[...] = y


def matmul_bias(x, w, b, *, relu_in=False, relu_out=False):
    # x: (M, K) f32, w: (K, N) bf16/f32, b: (N,) f32
    M, K = x.shape
    N = w.shape[1]
    tm = _row_tile(M)
    tn = _tile_multiple_of_128(N, 256) or N
    tk = _tile_multiple_of_128(K, 512) or K
    grid = (M // tm, N // tn, K // tk)
    kernel = functools.partial(_matmul_bias_kernel, relu_in=relu_in,
                               relu_out=relu_out)
    return pl.pallas_call(
        kernel,
        out_shape=jax.ShapeDtypeStruct((M, N), jnp.float32),
        grid=grid,
        in_specs=[
            pl.BlockSpec((tm, tk), lambda m, n, k: (m, k)),
            pl.BlockSpec((tk, tn), lambda m, n, k: (k, n)),
            pl.BlockSpec((1, tn), lambda m, n, k: (0, n)),
        ],
        out_specs=pl.BlockSpec((tm, tn), lambda m, n, k: (m, n)),
        scratch_shapes=[pltpu.VMEM((tm, tn), jnp.float32)],
        compiler_params=pltpu.CompilerParams(
            dimension_semantics=("parallel", "parallel", "arbitrary")),
    )(x, w, b.reshape(1, -1))


# ----------------------------------------------------------------------------
# Kernel 2: grouped 3x3 conv (2 out-channels per in-channel), stride 1, pad 1.
# Input is zero-padded (glue); the kernel applies both weight rows per input
# channel and writes [even-half | odd-half] within each channel chunk.
# TODO(synk): the 1-pixel halo is still materialized by a glue jnp.pad.
# ----------------------------------------------------------------------------
def _dw3x3_pair_kernel(xp_ref, w_ref, b_ref, o_ref):
    H, W = o_ref.shape[1], o_ref.shape[2]
    x0 = xp_ref[0, 0:H, 0:W, :]
    acc_a = x0 * w_ref[0, 0, :]
    acc_b = x0 * w_ref[1, 0, :]
    for k in range(1, 9):
        dy, dx = k // 3, k % 3
        t = xp_ref[0, dy:dy + H, dx:dx + W, :]
        acc_a = acc_a + t * w_ref[0, k, :]
        acc_b = acc_b + t * w_ref[1, k, :]
    tc = acc_a.shape[-1]
    o_ref[0, :, :, 0:tc] = acc_a + b_ref[0, :]
    o_ref[0, :, :, tc:2 * tc] = acc_b + b_ref[1, :]


def depthwise3x3_pair(x, w, b):
    # x: (N, H, W, C); w: (2, 9, C); b: (2, C)  ->  (N, H, W, 2C)
    Nb, H, W, C = x.shape
    tc = _channel_tile(C)
    nc = C // tc
    xp = jnp.pad(x, ((0, 0), (1, 1), (1, 1), (0, 0)))
    return pl.pallas_call(
        _dw3x3_pair_kernel,
        out_shape=jax.ShapeDtypeStruct((Nb, H, W, 2 * C), jnp.float32),
        grid=(Nb, nc),
        in_specs=[
            pl.BlockSpec((1, H + 2, W + 2, tc), lambda n, c: (n, 0, 0, c)),
            pl.BlockSpec((2, 9, tc), lambda n, c: (0, 0, c)),
            pl.BlockSpec((2, tc), lambda n, c: (0, c)),
        ],
        out_specs=pl.BlockSpec((1, H, W, 2 * tc), lambda n, c: (n, 0, 0, c)),
        compiler_params=pltpu.CompilerParams(
            dimension_semantics=("parallel", "parallel")),
    )(xp, w, b)


# ----------------------------------------------------------------------------
# Kernel 2b: same grouped 3x3 conv, fused with ReLU + global average pooling.
# Used for the last separable so the (N, H, W, 2048) tensor never hits HBM.
# ----------------------------------------------------------------------------
def _dw3x3_gap_kernel(xp_ref, w_ref, b_ref, o_ref):
    H = xp_ref.shape[1] - 2
    W = xp_ref.shape[2] - 2
    x0 = xp_ref[:, 0:H, 0:W, :]
    acc_a = x0 * w_ref[0, 0, :]
    acc_b = x0 * w_ref[1, 0, :]
    for k in range(1, 9):
        dy, dx = k // 3, k % 3
        t = xp_ref[:, dy:dy + H, dx:dx + W, :]
        acc_a = acc_a + t * w_ref[0, k, :]
        acc_b = acc_b + t * w_ref[1, k, :]
    acc_a = jnp.maximum(acc_a + b_ref[0, :], 0.0)
    acc_b = jnp.maximum(acc_b + b_ref[1, :], 0.0)
    tc = acc_a.shape[-1]
    o_ref[:, 0:tc] = jnp.mean(acc_a, axis=(1, 2))
    o_ref[:, tc:2 * tc] = jnp.mean(acc_b, axis=(1, 2))


def depthwise3x3_gap(x, w, b):
    # x: (N, H, W, C) -> (N, 2C): grouped 3x3 conv, ReLU, global average pool.
    Nb, H, W, C = x.shape
    tc = _channel_tile(C)
    nc = C // tc
    xp = jnp.pad(x, ((0, 0), (1, 1), (1, 1), (0, 0)))
    return pl.pallas_call(
        _dw3x3_gap_kernel,
        out_shape=jax.ShapeDtypeStruct((Nb, 2 * C), jnp.float32),
        grid=(nc,),
        in_specs=[
            pl.BlockSpec((Nb, H + 2, W + 2, tc), lambda c: (0, 0, 0, c)),
            pl.BlockSpec((2, 9, tc), lambda c: (0, 0, c)),
            pl.BlockSpec((2, tc), lambda c: (0, c)),
        ],
        out_specs=pl.BlockSpec((Nb, 2 * tc), lambda c: (0, c)),
        compiler_params=pltpu.CompilerParams(dimension_semantics=("parallel",)),
    )(xp, w, b)


# ----------------------------------------------------------------------------
# Kernel 3: MaxPool2d(kernel=3, stride=2, pad=1) computed at stride 2 directly
# (sublane-strided column reads + even/odd row reshape) fused with the
# residual add.  A dense stride-1 fallback is kept for portability.
# ----------------------------------------------------------------------------
def _maxpool_add_kernel(xp_ref, res_ref, o_ref):
    Ho, Wo = o_ref.shape[1], o_ref.shape[2]
    # column (W) decimation via sublane-strided reads of the padded input
    e0 = xp_ref[0, :, pl.ds(0, Wo, stride=2), :]   # cols 2j
    o0 = xp_ref[0, :, pl.ds(1, Wo, stride=2), :]   # cols 2j+1
    e1 = xp_ref[0, :, pl.ds(2, Wo, stride=2), :]   # cols 2j+2
    colmax = jnp.maximum(jnp.maximum(e0, o0), e1)  # (H+2, Wo, tc)
    # row (H) decimation via an even/odd split of the leading dim (layout no-op)
    a = colmax[0:2 * Ho].reshape(Ho, 2, Wo, -1)
    c = colmax[2:2 * Ho + 2].reshape(Ho, 2, Wo, -1)
    pooled = jnp.maximum(jnp.maximum(a[:, 0], a[:, 1]), c[:, 0])
    o_ref[0] = pooled + res_ref[0]


def _maxpool_s2_add_fused(x, res):
    Nb, H, W, C = x.shape
    Ho, Wo = res.shape[1], res.shape[2]
    tc = _channel_tile(C)
    nc = C // tc
    xp = jnp.pad(x, ((0, 0), (1, 1), (1, 1), (0, 0)),
                 constant_values=-jnp.inf)
    return pl.pallas_call(
        _maxpool_add_kernel,
        out_shape=jax.ShapeDtypeStruct((Nb, Ho, Wo, C), jnp.float32),
        grid=(Nb, nc),
        in_specs=[
            pl.BlockSpec((1, H + 2, W + 2, tc), lambda n, c: (n, 0, 0, c)),
            pl.BlockSpec((1, Ho, Wo, tc), lambda n, c: (n, 0, 0, c)),
        ],
        out_specs=pl.BlockSpec((1, Ho, Wo, tc), lambda n, c: (n, 0, 0, c)),
        compiler_params=pltpu.CompilerParams(
            dimension_semantics=("parallel", "parallel")),
    )(xp, res)


def _maxpool3_dense_kernel(xp_ref, o_ref):
    H, W = o_ref.shape[1], o_ref.shape[2]
    acc = xp_ref[0, 0:H, 0:W, :]
    for k in range(1, 9):
        dy, dx = k // 3, k % 3
        acc = jnp.maximum(acc, xp_ref[0, dy:dy + H, dx:dx + W, :])
    o_ref[0] = acc


def _maxpool_dense(x):
    Nb, H, W, C = x.shape
    tc = _channel_tile(C)
    nc = C // tc
    xp = jnp.pad(x, ((0, 0), (1, 1), (1, 1), (0, 0)),
                 constant_values=-jnp.inf)
    return pl.pallas_call(
        _maxpool3_dense_kernel,
        out_shape=jax.ShapeDtypeStruct((Nb, H, W, C), jnp.float32),
        grid=(Nb, nc),
        in_specs=[pl.BlockSpec((1, H + 2, W + 2, tc), lambda n, c: (n, 0, 0, c))],
        out_specs=pl.BlockSpec((1, H, W, tc), lambda n, c: (n, 0, 0, c)),
        compiler_params=pltpu.CompilerParams(
            dimension_semantics=("parallel", "parallel")),
    )(xp)


def maxpool3x3_s2_add(x, res):
    try:
        return _maxpool_s2_add_fused(x, res)
    except Exception:
        # Portability fallback if strided in-kernel reads are unavailable:
        # dense stride-1 pool kernel + glue subsample + residual add.
        dense = _maxpool_dense(x)
        return dense[:, ::2, ::2, :] + res


# ----------------------------------------------------------------------------
# Kernel 4: fused FC tail: fc1 -> ReLU -> fc2 -> ReLU -> fc3 (lane-dense 128
# wide output, sliced to num_classes outside).  Dropout(p=0.2) is identity.
# ----------------------------------------------------------------------------
def _fc_tail_kernel(g_ref, w1_ref, b1_ref, w2_ref, b2_ref, w3_ref, b3_ref, o_ref):
    h = g_ref[...]
    h = jnp.dot(h.astype(w1_ref.dtype), w1_ref[...],
                preferred_element_type=jnp.float32) + b1_ref[...]
    h = jnp.maximum(h, 0.0)
    # TODO(synk): Dropout(p=0.2) implemented as inference-mode identity.
    h = jnp.dot(h.astype(w2_ref.dtype), w2_ref[...],
                preferred_element_type=jnp.float32) + b2_ref[...]
    h = jnp.maximum(h, 0.0)
    h = jnp.dot(h.astype(w3_ref.dtype), w3_ref[...],
                preferred_element_type=jnp.float32) + b3_ref[...]
    o_ref[...] = h


def fc_tail(g, kp):
    Nb = g.shape[0]
    n_out = kp["fc3_w"].shape[1]
    return pl.pallas_call(
        _fc_tail_kernel,
        out_shape=jax.ShapeDtypeStruct((Nb, n_out), jnp.float32),
    )(g, kp["fc1_w"], kp["fc1_b"].reshape(1, -1),
      kp["fc2_w"], kp["fc2_b"].reshape(1, -1),
      kp["fc3_w"], kp["fc3_b"].reshape(1, -1))


# ----------------------------------------------------------------------------
# Model glue
# ----------------------------------------------------------------------------
def separable(x, sp, *, relu_in):
    """Separable = Conv2d(cin, mid, 1) -> Conv2d(mid, 2*mid, 3, pad=1, groups=mid)."""
    Nb, H, W, Cin = x.shape
    mid_p = sp["w1"].shape[1]
    y = matmul_bias(x.reshape(-1, Cin), sp["w1"], sp["b1"], relu_in=relu_in)
    y = y.reshape(Nb, H, W, mid_p)
    return depthwise3x3_pair(y, sp["wd"], sp["bd"])


def separable_gap(x, sp, *, relu_in):
    """Last separable, fused with the trailing ReLU + global average pool."""
    Nb, H, W, Cin = x.shape
    mid_p = sp["w1"].shape[1]
    y = matmul_bias(x.reshape(-1, Cin), sp["w1"], sp["b1"], relu_in=relu_in)
    y = y.reshape(Nb, H, W, mid_p)
    return depthwise3x3_gap(y, sp["wd"], sp["bd"])


def exit_flow_forward(x_nchw, kp, num_classes=10):
    x = jnp.transpose(x_nchw, (0, 2, 3, 1)).astype(jnp.float32)   # NCHW -> NHWC
    Nb, H, W, Cin = x.shape
    assert H % 2 == 0 and W % 2 == 0
    Ho, Wo = H // 2, W // 2

    # --- residual: Conv2d(728, 1024, k=1, stride=2) + folded BatchNorm2d ---
    # (stride-2 of a 1x1 conv == spatial subsample; output channels are already
    #  permuted into the block branch's layout at parameter-prep time)
    x_sub = x[:, ::2, ::2, :].reshape(-1, Cin)
    x_res = matmul_bias(x_sub, kp["res_w"], kp["res_b"]).reshape(Nb, Ho, Wo, -1)

    # --- block: ReLU, Sep(728,364,728), ReLU, Sep(728,512,1024), MaxPool ---
    b = separable(x, kp["blk1"], relu_in=True)
    b = separable(b, kp["blk2"], relu_in=True)
    y = maxpool3x3_s2_add(b, x_res)          # fused MaxPool(3,2,1) + residual add

    # --- tail: Sep, ReLU, Sep, ReLU, GAP, fc1, ReLU, fc2, ReLU, fc3 ---
    t = separable(y, kp["tail1"], relu_in=False)
    g = separable_gap(t, kp["tail2"], relu_in=True)
    out = fc_tail(g, kp)
    return out[:, :num_classes]


# ----------------------------------------------------------------------------
# Parameters: PyTorch-layout init + preparation (BN folding, channel-layout
# permutation for the repeat-free grouped conv, bf16 cast, fc3 lane padding).
# ----------------------------------------------------------------------------
def _make_sel_out(mid, mid_p, tc):
    """Kernel-layout output channel -> natural (PyTorch) channel (-1 = zero pad)."""
    nc = mid_p // tc
    sel = []
    for c in range(nc):
        for h in range(2):
            for q in range(tc):
                g = c * tc + q
                sel.append(2 * g + h if g < mid else -1)
    return jnp.asarray(sel, dtype=jnp.int32)


def _remap_rows(w, sel):
    safe = jnp.clip(sel, 0, w.shape[0] - 1)
    gathered = jnp.take(w, safe, axis=0)
    return jnp.where((sel >= 0)[:, None], gathered, jnp.zeros_like(gathered))


def init_params(key, num_classes=10):
    keys = iter(jax.random.split(key, 40))

    def uniform(shape, bound):
        return jax.random.uniform(next(keys), shape, jnp.float32, -bound, bound)

    def conv1x1(cin, cout):
        s = 1.0 / float(cin) ** 0.5
        return {"w": uniform((cout, cin), s), "b": uniform((cout,), s)}

    def dwconv(cout):
        s = 1.0 / 3.0
        return {"w": uniform((cout, 3, 3), s), "b": uniform((cout,), s)}

    def sep(cin, mid, cout):
        return {"conv1x1": conv1x1(cin, mid), "dw": dwconv(cout)}

    return {
        "res_conv": conv1x1(728, 1024),
        "res_bn": {
            "gamma": 1.0 + 0.1 * jax.random.normal(next(keys), (1024,), jnp.float32),
            "beta": 0.1 * jax.random.normal(next(keys), (1024,), jnp.float32),
            "mean": jnp.zeros((1024,), jnp.float32),
            "var": jnp.ones((1024,), jnp.float32),
        },
        "blk1": sep(728, 364, 728),
        "blk2": sep(728, 512, 1024),
        "tail1": sep(1024, 768, 1536),
        "tail2": sep(1536, 1024, 2048),
        "fc1": conv1x1(2048, 1024),
        "fc2": conv1x1(1024, 512),
        "fc3": conv1x1(512, num_classes),
    }


def prepare_params(p, num_classes=10):
    f32, bf16 = jnp.float32, jnp.bfloat16
    kp = {}

    # residual conv + BatchNorm2d(1024) folded (eval-mode running stats)
    bn = p["res_bn"]
    scale = bn["gamma"] / jnp.sqrt(bn["var"] + 1e-5)
    res_w = p["res_conv"]["w"] * scale[:, None]                    # (1024, 728)
    res_b = (p["res_conv"]["b"] - bn["mean"]) * scale + bn["beta"]

    def sep_prep(sp, sel_in):
        w1_t = jnp.transpose(sp["conv1x1"]["w"])                   # (cin, mid)
        if sel_in is not None:
            w1_t = _remap_rows(w1_t, sel_in)
        mid = w1_t.shape[1]
        mid_p = _round_up(mid, 128)
        cin_k = w1_t.shape[0]
        w1_k = jnp.zeros((cin_k, mid_p), f32).at[:, :mid].set(w1_t)
        b1_k = jnp.zeros((mid_p,), f32).at[:mid].set(sp["conv1x1"]["b"])
        wd9 = sp["dw"]["w"].reshape(2 * mid, 9)
        wa = jnp.zeros((9, mid_p), f32).at[:, :mid].set(jnp.transpose(wd9[0::2]))
        wb = jnp.zeros((9, mid_p), f32).at[:, :mid].set(jnp.transpose(wd9[1::2]))
        ba = jnp.zeros((mid_p,), f32).at[:mid].set(sp["dw"]["b"][0::2])
        bb = jnp.zeros((mid_p,), f32).at[:mid].set(sp["dw"]["b"][1::2])
        tc = _channel_tile(mid_p)
        sel_out = _make_sel_out(mid, mid_p, tc)
        prepared = {"w1": w1_k.astype(bf16), "b1": b1_k,
                    "wd": jnp.stack([wa, wb]), "bd": jnp.stack([ba, bb])}
        return prepared, sel_out

    kp["blk1"], sel1 = sep_prep(p["blk1"], None)
    kp["blk2"], sel2 = sep_prep(p["blk2"], sel1)
    kp["tail1"], sel3 = sep_prep(p["tail1"], sel2)
    kp["tail2"], sel4 = sep_prep(p["tail2"], sel3)

    # residual output columns permuted into the block-branch (blk2) layout
    kp["res_w"] = jnp.take(jnp.transpose(res_w), sel2, axis=1).astype(bf16)
    kp["res_b"] = jnp.take(res_b, sel2, axis=0)

    # FC tail: fc1 rows permuted into tail2's layout, fc3 padded lane-dense (128)
    kp["fc1_w"] = _remap_rows(jnp.transpose(p["fc1"]["w"]), sel4).astype(bf16)
    kp["fc1_b"] = p["fc1"]["b"]
    kp["fc2_w"] = jnp.transpose(p["fc2"]["w"]).astype(bf16)
    kp["fc2_b"] = p["fc2"]["b"]
    w3 = jnp.transpose(p["fc3"]["w"])                              # (512, nc)
    kp["fc3_w"] = jnp.zeros((512, 128), f32).at[:, :num_classes].set(w3).astype(bf16)
    kp["fc3_b"] = jnp.zeros((128,), f32).at[:num_classes].set(p["fc3"]["b"])
    return kp


if __name__ == "__main__":
    # Channel dims are fixed by the module (input must have 728 channels);
    # keep batch / spatial small.
    Nb, Cin, H, W = 2, 728, 8, 8
    x = jax.random.normal(jax.random.PRNGKey(0), (Nb, Cin, H, W), jnp.float32)
    params = init_params(jax.random.PRNGKey(0), num_classes=10)
    kparams = prepare_params(params, num_classes=10)

    out = exit_flow_forward(x, kparams, num_classes=10)
    out = jax.block_until_ready(out)

    assert out.shape == (Nb, 10), out.shape
    assert bool(jnp.all(jnp.isfinite(out)))
    print("KERNEL_OK")
</pallas_src>

<mosaic_0001>
module attributes {stable_mosaic.version = 11 : i64} {
  func.func @_matmul_bias_kernel(%arg0: i32, %arg1: i32, %arg2: i32, %arg3: memref<32x728xf32, #tpu.memory_space<vmem>>, %arg4: memref<728x256xbf16, #tpu.memory_space<vmem>>, %arg5: memref<1x256xf32, #tpu.memory_space<vmem>>, %arg6: memref<32x256xf32, #tpu.memory_space<vmem>>, %arg7: memref<32x256xf32, #tpu.memory_space<vmem>>) attributes {dimension_semantics = [#tpu.dimension_semantics<parallel>, #tpu.dimension_semantics<parallel>, #tpu.dimension_semantics<arbitrary>], iteration_bounds = array<i64: 1, 4, 1>, scalar_prefetch = 0 : i64, scratch_operands = 1 : i64, tpu.core_type = #tpu.core_type<tc>, window_params = [{transform_indices = @transform_0, window_bounds = array<i64: 32, 728>}, {transform_indices = @transform_1, window_bounds = array<i64: 728, 256>}, {transform_indices = @transform_2, window_bounds = array<i64: 1, 256>}, {transform_indices = @transform_3, window_bounds = array<i64: 32, 256>}]} {
    %c0_i32 = arith.constant 0 : i32
    %0 = arith.cmpi eq, %arg2, %c0_i32 : i32
    %1 = arith.extui %0 : i1 to i32
    %c0_i32_0 = arith.constant 0 : i32
    %2 = arith.cmpi ne, %1, %c0_i32_0 : i32
    scf.if %2 {
      %cst_10 = arith.constant 0.000000e+00 : f32
      %13 = vector.broadcast %cst_10 : f32 to vector<32x256xf32>
      %c0_11 = arith.constant 0 : index
      %c0_12 = arith.constant 0 : index
      %14 = vector.load %arg7[%c0_11, %c0_12] : memref<32x256xf32, #tpu.memory_space<vmem>>, vector<32x256xf32>
      tpu.vector_store %arg7[%c0_11, %c0_12], %13 {strides = array<i32>} : memref<32x256xf32, #tpu.memory_space<vmem>>, vector<32x256xf32>,
    } else {
    }
    %c0 = arith.constant 0 : index
    %c0_1 = arith.constant 0 : index
    %3 = vector.load %arg3[%c0, %c0_1] : memref<32x728xf32, #tpu.memory_space<vmem>>, vector<32x728xf32>
    %c0_2 = arith.constant 0 : index
    %c0_3 = arith.constant 0 : index
    %4 = vector.load %arg7[%c0_2, %c0_3] : memref<32x256xf32, #tpu.memory_space<vmem>>, vector<32x256xf32>
    %5 = arith.truncf %3 : vector<32x728xf32> to vector<32x728xbf16>
    %c0_4 = arith.constant 0 : index
    %c0_5 = arith.constant 0 : index
    %6 = vector.load %arg4[%c0_4, %c0_5] : memref<728x256xbf16, #tpu.memory_space<vmem>>, vector<728x256xbf16>
    %cst = arith.constant dense<0.000000e+00> : vector<32x256xf32>
    %7 = tpu.matmul %5, %6, %cst {dimension_numbers = #tpu.dot_dimension_numbers<[1], [0], [0], [1], [0, 0, 1, 1], [], []>} : vector<32x728xbf16>, vector<728x256xbf16>, vector<32x256xf32> -> vector<32x256xf32>
    %8 = arith.addf %4, %7 : vector<32x256xf32>
    %c0_6 = arith.constant 0 : index
    %c0_7 = arith.constant 0 : index
    %9 = vector.load %arg7[%c0_6, %c0_7] : memref<32x256xf32, #tpu.memory_space<vmem>>, vector<32x256xf32>
    tpu.vector_store %arg7[%c0_6, %c0_7], %8 {strides = array<i32>} : memref<32x256xf32, #tpu.memory_space<vmem>>, vector<32x256xf32>,
    %c0_i32_8 = arith.constant 0 : i32
    %10 = arith.cmpi eq, %arg2, %c0_i32_8 : i32
    %11 = arith.extui %10 : i1 to i32
    %c0_i32_9 = arith.constant 0 : i32
    %12 = arith.cmpi ne, %11, %c0_i32_9 : i32
    scf.if %12 {
      %c0_10 = arith.constant 0 : index
      %c0_11 = arith.constant 0 : index
      %13 = vector.load %arg7[%c0_10, %c0_11] : memref<32x256xf32, #tpu.memory_space<vmem>>, vector<32x256xf32>
      %c0_12 = arith.constant 0 : index
      %c0_13 = arith.constant 0 : index
      %14 = vector.load %arg5[%c0_12, %c0_13] : memref<1x256xf32, #tpu.memory_space<vmem>>, vector<1x256xf32>
      %15 = vector.broadcast %14 : vector<1x256xf32> to vector<32x256xf32>
      %16 = arith.addf %13, %15 : vector<32x256xf32>
      %c0_14 = arith.constant 0 : index
      %c0_15 = arith.constant 0 : index
      %17 = vector.load %arg6[%c0_14, %c0_15] : memref<32x256xf32, #tpu.memory_space<vmem>>, vector<32x256xf32>
      tpu.vector_store %arg6[%c0_14, %c0_15], %16 {strides = array<i32>} : memref<32x256xf32, #tpu.memory_space<vmem>>, vector<32x256xf32>,
    } else {
    }
    return
  }
  func.func @transform_0(%arg0: i32, %arg1: i32, %arg2: i32) -> (i32, i32) {
    %c0_i32 = arith.constant 0 : i32
    return %arg0, %arg2 : i32, i32
  }
  func.func @transform_1(%arg0: i32, %arg1: i32, %arg2: i32) -> (i32, i32) {
    %c0_i32 = arith.constant 0 : i32
    return %arg2, %arg1 : i32, i32
  }
  func.func @transform_2(%arg0: i32, %arg1: i32, %arg2: i32) -> (i32, i32) {
    %c0_i32 = arith.constant 0 : i32
    %c0_i32_0 = arith.constant 0 : i32
    return %c0_i32, %arg1 : i32, i32
  }
  func.func @transform_3(%arg0: i32, %arg1: i32, %arg2: i32) -> (i32, i32) {
    %c0_i32 = arith.constant 0 : i32
    return %arg0, %arg1 : i32, i32
  }
}

</mosaic_0001>

<llo_original>
// kernel: tpu_custom_call.1
$region0: #{tpu_custom_call.1}
  #allocation0 [shape = 'u32[]', space=smem, size = 0x4, offset = 0x4, fixed_abs, tag = 'smem constant byte address 0x4 - core index']
  #allocation1 [shape = 'u32[144,128]{1,0:T(1,128)}', space=vmem, size = 0x12000, scoped, tag = 'internal scratch']
  #allocation2 [shape = 'f32[32,256]{1,0:T(8,128)}', space=vmem, size = 0x8000, scoped, tag = 'scratch operand']
  %s0 = inlined_call_operand.hbm [shape: f32[32,728], index: 0, kind: input, shape index: {}]
  %s1 = inlined_call_operand.hbm [shape: bf16[728,1024], index: 1, kind: input, shape index: {}]
  %s2 = inlined_call_operand.hbm [shape: f32[1,1024], index: 2, kind: input, shape index: {}]
  %s3 = inlined_call_operand.hbm [shape: f32[32,1024], index: 3, kind: output, shape index: {}]
  %s4 = sld [smem:[#allocation0]]
  $region65: #{tpu_custom_call.1} parent=0
    _
  %s6 = ssub.s32 1, %s4
  %s7 = scalar_select 0, %s6, %s4
  $region1: #{tpu_custom_call.1} parent=0
    #allocation3 [shape = 'u8[98304]{0}', space=vmem, size = 0x18000, scoped, tag = 'input window, operand 0, single buffered']
    #allocation4 [shape = 's32[2]{0}', space=sflag, size = 0x8, scoped, tag = 'scoped memory for tpu_custom_call.1']
    #allocation5 [shape = 's32[2]{0}', space=sflag, size = 0x8, scoped, tag = 'scoped memory for tpu_custom_call.1']
    #allocation6 [shape = 'u8[745472]{0}', space=vmem, size = 0xb6000, scoped, tag = 'input window, operand 1']
    #allocation7 [shape = 's32[2]{0}', space=sflag, size = 0x8, scoped, tag = 'scoped memory for tpu_custom_call.1']
    #allocation8 [shape = 'u8[2048]{0}', space=vmem, size = 0x800, scoped, tag = 'input window, operand 2']
    #allocation9 [shape = 'u8[65536]{0}', space=vmem, size = 0x10000, scoped, tag = 'output window, operand 0']
    %8 = vsyncpa [#allocation4], 0
    %9 = vsyncpa [#allocation7], 0
    %s10 = scalar_lea.sflag [#allocation7], 1
    %11 = vsyncpa %s10, 0
    %12 = vsyncpa [#allocation5], 0
    %s13 = scalar_lea.sflag [#allocation5], 1
    %14 = vsyncpa %s13, 0
    loop: start=0, step=1, limit=6
    $region2: #{tpu_custom_call.1} parent=1 // loop_pre_header
      _
    $region3: #{tpu_custom_call.1} parent=1 // loop_header
      %s16 = sphi 0, %s20
      %p17 = scmp.ge.s32.totalorder %s16, 6
      %s23 = sphi 0, %s42
      %s24 = sphi 0, %s38
      %s25 = sphi 0, %s34
      %s26 = sphi 0, %s23
      %s27 = sphi 0, %s24
      %s28 = sphi 0, %s25
      %s29 = sphi 0, %s26
      %s30 = sphi 0, %s27
      %s31 = sphi 0, %s28
      %s47 = sphi 0, %s49
      %s50 = sphi 0, %s47
      %s51 = sphi 0, %s50
      %s67 = sphi 0, %s51
      %s75 = sphi 0, %s77
      %s78 = sphi 0, %s75
      %s79 = sphi 0, %s78
      %s95 = sphi 0, %s79
      %s101 = sphi 0, %s103
      %s104 = sphi 0, %s101
      %s105 = sphi 0, %s104
      %s121 = sphi 0, %s105
      %s129 = sphi 0, %s131
      %s132 = sphi 0, %s129
      %s133 = sphi 0, %s132
      %s149 = sphi 0, %s133
    $region4: #{tpu_custom_call.1} parent=1 // loop_header_branch
      %19 = sbr.rel (%p17) target = $region8
    $region5: #{tpu_custom_call.1} parent=1 // loop_body
      %s21 = ssub.s32 %s16, 1
      %s22 = ssub.s32 %s16, 2
      %s32 = sadd.s32 1, %s25
      %p33 = scmp.ge.s32.totalorder %s32, 1
      %s34 = scalar_select %p33, 0, %s32
      %s35 = sadd.s32 1, %s24
      %s36 = scalar_select %p33, %s35, %s24
      %p37 = scmp.ge.s32.totalorder %s36, 4
      %s38 = scalar_select %p37, 0, %s36
      %s39 = sadd.s32 1, %s23
      %s40 = scalar_select %p37, %s39, %s23
      %p41 = scmp.ge.s32.totalorder %s40, 1
      %s42 = scalar_select %p41, 0, %s40
      %s43 = ssub.s32 %s23, %s42
      %s44 = ssub.s32 %s25, %s34
      %s45 = sor.u32 %s43, %s44
      %p46 = scmp.eq.s32.totalorder %s45, 0
      %s48 = sadd.s32 %s47, 1
      %s49 = scalar_select %p46, %s47, %s48
      %p52 = pneg %p46
      %p53 = scmp.eq.s32.totalorder %s16, 3
      %p54 = por %p52, %p53
      %p55 = scmp.ne.s32.totalorder %s47, %s50
      %p56 = scmp.eq.s32.totalorder %s16, 0
      %p57 = por %p55, %p56
      %p58 = scmp.ne.s32.totalorder %s47, %s50
      %p59 = scmp.eq.s32.totalorder %s21, 3
      %p60 = por %p58, %p59
      %p61 = scmp.ne.s32.totalorder %s50, %s51
      %p62 = scmp.eq.s32.totalorder %s21, 0
      %p63 = por %p61, %p62
      %p64 = scmp.ne.s32.totalorder %s50, %s51
      %p65 = scmp.eq.s32.totalorder %s22, 3
      %p66 = por %p64, %p65
      %p68 = scmp.ne.s32.totalorder %s51, %s67
      %p69 = scmp.eq.s32.totalorder %s22, 0
      %p70 = por %p68, %p69
      %s71 = ssub.s32 %s25, %s34
      %s72 = ssub.s32 %s24, %s38
      %s73 = sor.u32 %s71, %s72
      %p74 = scmp.eq.s32.totalorder %s73, 0
      %s76 = sadd.s32 %s75, 1
      %s77 = scalar_select %p74, %s75, %s76
      %p80 = pneg %p74
      %p81 = scmp.eq.s32.totalorder %s16, 3
      %p82 = por %p80, %p81
      %p83 = scmp.ne.s32.totalorder %s75, %s78
      %p84 = scmp.eq.s32.totalorder %s16, 0
      %p85 = por %p83, %p84
      %p86 = scmp.ne.s32.totalorder %s75, %s78
      %p87 = scmp.eq.s32.totalorder %s21, 3
      %p88 = por %p86, %p87
      %p89 = scmp.ne.s32.totalorder %s78, %s79
      %p90 = scmp.eq.s32.totalorder %s21, 0
      %p91 = por %p89, %p90
      %p92 = scmp.ne.s32.totalorder %s78, %s79
      %p93 = scmp.eq.s32.totalorder %s22, 3
      %p94 = por %p92, %p93
      %p96 = scmp.ne.s32.totalorder %s79, %s95
      %p97 = scmp.eq.s32.totalorder %s22, 0
      %p98 = por %p96, %p97
      %s99 = ssub.s32 %s24, %s38
      %p100 = scmp.eq.s32.totalorder %s99, 0
      %s102 = sadd.s32 %s101, 1
      %s103 = scalar_select %p100, %s101, %s102
      %p106 = pneg %p100
      %p107 = scmp.eq.s32.totalorder %s16, 3
      %p108 = por %p106, %p107
      %p109 = scmp.ne.s32.totalorder %s101, %s104
      %p110 = scmp.eq.s32.totalorder %s16, 0
      %p111 = por %p109, %p110
      %p112 = scmp.ne.s32.totalorder %s101, %s104
      %p113 = scmp.eq.s32.totalorder %s21, 3
      %p114 = por %p112, %p113
      %p115 = scmp.ne.s32.totalorder %s104, %s105
      %p116 = scmp.eq.s32.totalorder %s21, 0
      %p117 = por %p115, %p116
      %p118 = scmp.ne.s32.totalorder %s104, %s105
      %p119 = scmp.eq.s32.totalorder %s22, 3
      %p120 = por %p118, %p119
      %p122 = scmp.ne.s32.totalorder %s105, %s121
      %p123 = scmp.eq.s32.totalorder %s22, 0
      %p124 = por %p122, %p123
      %s125 = ssub.s32 %s23, %s42
      %s126 = ssub.s32 %s24, %s38
      %s127 = sor.u32 %s125, %s126
      %p128 = scmp.eq.s32.totalorder %s127, 0
      %s130 = sadd.s32 %s129, 1
      %s131 = scalar_select %p128, %s129, %s130
      %p134 = pneg %p128
      %p135 = scmp.eq.s32.totalorder %s16, 3
      %p136 = por %p134, %p135
      %p137 = scmp.ne.s32.totalorder %s129, %s132
      %p138 = scmp.eq.s32.totalorder %s16, 0
      %p139 = por %p137, %p138
      %p140 = scmp.ne.s32.totalorder %s129, %s132
      %p141 = scmp.eq.s32.totalorder %s21, 3
      %p142 = por %p140, %p141
      %p143 = scmp.ne.s32.totalorder %s132, %s133
      %p144 = scmp.eq.s32.totalorder %s21, 0
      %p145 = por %p143, %p144
      %p146 = scmp.ne.s32.totalorder %s132, %s133
      %p147 = scmp.eq.s32.totalorder %s22, 3
      %p148 = por %p146, %p147
      %p150 = scmp.ne.s32.totalorder %s133, %s149
      %p151 = scmp.eq.s32.totalorder %s22, 0
      %p152 = por %p150, %p151
      %p153 = scmp.le.s32.totalorder 1, %s16
      %p154 = scmp.lt.s32.totalorder %s16, 5
      %p155 = pnand %p153, %p154
      %p156 = pneg %p155
      // Predicated region
      $region9: #{tpu_custom_call.1} parent=5 // pred_check
        _
      $region10: #{tpu_custom_call.1} parent=5 // pred_check_branch
        %158 = sbr.rel (%p155) target = $region12
      $region11: #{tpu_custom_call.1} parent=5 // pred_region
        %s159 = ssub.s32 %s16, 1
        // Predicated region
        $region13: #{tpu_custom_call.1} parent=11 // pred_check
          %p160 = pneg %p63
        $region14: #{tpu_custom_call.1} parent=11 // pred_check_branch
          %162 = sbr.rel (%p160) target = $region16
        $region15: #{tpu_custom_call.1} parent=11 // pred_region
          %s163 = smul.u32 4, %s26
          %s164 = smul.u32 6, %s28
          %s166 = ssub.s32 3072, 3072
          %167 = vsyncadd [#allocation4], %s166
          %s168 = smul.addr %s163, 6
          %s169 = sadd.s32 %s164, %s168
          %s170 = smul.addr %s169, 128
          %s171 = scalar_lea.hbm %s0, %s170
          %s172 = sshll.u32 [#allocation3], 4
          %s173 = int_to_ptr.vmem [resolvable:$true] %s172
          %178 = dma.hbm_to_vmem [thread:$0]  %s171, 3072, %s173, [#allocation4], 768, 768, 48
        $region16: #{tpu_custom_call.1} parent=11 // pred_fallthru
          _
      $region12: #{tpu_custom_call.1} parent=5 // pred_fallthru
        _
      %p179 = scmp.lt.s32.totalorder %s16, 4
      // Predicated region
      $region17: #{tpu_custom_call.1} parent=5 // pred_check
        %p180 = pneg %p179
      $region18: #{tpu_custom_call.1} parent=5 // pred_check_branch
        %182 = sbr.rel (%p180) target = $region20
      $region19: #{tpu_custom_call.1} parent=5 // pred_region
        // Predicated region
        $region21: #{tpu_custom_call.1} parent=19 // pred_check
          %p183 = pneg %p85
        $region22: #{tpu_custom_call.1} parent=19 // pred_check_branch
          %185 = sbr.rel (%p183) target = $region24
        $region23: #{tpu_custom_call.1} parent=19 // pred_region
          %s186 = sand.u32 %s16, 1
          %s187 = scalar_lea.sflag [#allocation7], %s186
          %s188 = sand.u32 %s75, 1
          %s189 = smul.addr %s188, 728
          %s190 = scalar_lea.vmem [#allocation6], %s189
          %s191 = smul.u32 91, %s25
          %s192 = smul.u32 2, %s24
          %s194 = ssub.s32 11648, 11648
          %195 = vsyncadd %s187, %s194
          %s196 = smul.addr %s191, 8
          %s197 = sadd.s32 %s192, %s196
          %s198 = smul.addr %s197, 64
          %s199 = scalar_lea.hbm %s1, %s198
          %s200 = sshll.u32 %s190, 4
          %s201 = int_to_ptr.vmem [resolvable:$true] %s200
          %206 = dma.hbm_to_vmem [thread:$0]  %s199, 11648, %s201, %s187, 512, 128, 8
        $region24: #{tpu_custom_call.1} parent=19 // pred_fallthru
          _
        // Predicated region
        $region25: #{tpu_custom_call.1} parent=19 // pred_check
          %p207 = pneg %p111
        $region26: #{tpu_custom_call.1} parent=19 // pred_check_branch
          %209 = sbr.rel (%p207) target = $region28
        $region27: #{tpu_custom_call.1} parent=19 // pred_region
          %s210 = sand.u32 %s16, 1
          %s211 = scalar_lea.sflag [#allocation7], %s210
          %s212 = sand.u32 %s101, 1
          %s213 = smul.addr %s212, 2
          %s214 = scalar_lea.vmem [#allocation8], %s213
          %s215 = smul.u32 2, %s24
          %s217 = ssub.s32 32, 32
          %218 = vsyncadd %s211, %s217
          %s219 = smul.addr %s215, 16
          %s220 = scalar_lea.hbm %s2, %s219
          %s222 = sshll.u32 %s214, 4
          %s223 = int_to_ptr.vmem [resolvable:$true] %s222
          %225 = dma.hbm_to_vmem [thread:$0]  %s220, 32, %s223, %s211
        $region28: #{tpu_custom_call.1} parent=19 // pred_fallthru
          _
      $region20: #{tpu_custom_call.1} parent=5 // pred_fallthru
        _
      %p226 = scmp.le.s32.totalorder 1, %s16
      %p227 = scmp.lt.s32.totalorder %s16, 5
      %p228 = pnand %p226, %p227
      %p229 = pneg %p228
      // Predicated region
      $region29: #{tpu_custom_call.1} parent=5 // pred_check
        _
      $region30: #{tpu_custom_call.1} parent=5 // pred_check_branch
        %231 = sbr.rel (%p228) target = $region32
      $region31: #{tpu_custom_call.1} parent=5 // pred_region
        %s232 = ssub.s32 %s16, 1
        // Predicated region
        $region33: #{tpu_custom_call.1} parent=31 // pred_check
          %p233 = pneg %p63
        $region34: #{tpu_custom_call.1} parent=31 // pred_check_branch
          %235 = sbr.rel (%p233) target = $region36
        $region35: #{tpu_custom_call.1} parent=31 // pred_region
          %236 = dma.done [#allocation4], 3072
        $region36: #{tpu_custom_call.1} parent=31 // pred_fallthru
          _
        %s237 = sand.u32 %s21, 1
        %s238 = scalar_lea.sflag [#allocation7], %s237
        %s239 = sand.u32 %s78, 1
        %s240 = smul.addr %s239, 728
        %s241 = scalar_lea.vmem [#allocation6], %s240
        // Predicated region
        $region37: #{tpu_custom_call.1} parent=31 // pred_check
          %p242 = pneg %p91
        $region38: #{tpu_custom_call.1} parent=31 // pred_check_branch
          %244 = sbr.rel (%p242) target = $region40
        $region39: #{tpu_custom_call.1} parent=31 // pred_region
          %245 = dma.done %s238, 11648
        $region40: #{tpu_custom_call.1} parent=31 // pred_fallthru
          _
        %s246 = sand.u32 %s21, 1
        %s247 = scalar_lea.sflag [#allocation7], %s246
        %s248 = sand.u32 %s104, 1
        %s249 = smul.addr %s248, 2
        %s250 = scalar_lea.vmem [#allocation8], %s249
        // Predicated region
        $region41: #{tpu_custom_call.1} parent=31 // pred_check
          %p251 = pneg %p117
        $region42: #{tpu_custom_call.1} parent=31 // pred_check_branch
          %253 = sbr.rel (%p251) target = $region44
        $region43: #{tpu_custom_call.1} parent=31 // pred_region
          %254 = dma.done %s247, 32
        $region44: #{tpu_custom_call.1} parent=31 // pred_fallthru
          _
        %p255 = pneg %p63
        %p256 = pneg %p60
        %s257 = sand.u32 %s21, 1
        %s258 = scalar_lea.sflag [#allocation7], %s257
        %s259 = sand.u32 %s78, 1
        %s260 = smul.addr %s259, 728
        %s261 = scalar_lea.vmem [#allocation6], %s260
        %p262 = pneg %p91
        %p263 = pneg %p88
        %s264 = sand.u32 %s21, 1
        %s265 = scalar_lea.sflag [#allocation7], %s264
        %s266 = sand.u32 %s104, 1
        %s267 = smul.addr %s266, 2
        %s268 = scalar_lea.vmem [#allocation8], %s267
        %p269 = pneg %p117
        %p270 = pneg %p114
        %p271 = pneg %p145
        %p272 = pneg %p142
        %s273 = sand.u32 %s132, 1
        %s274 = scalar_lea.sflag [#allocation5], %s273
        %s275 = sand.u32 %s132, 1
        %s276 = smul.addr %s275, 64
        %s277 = scalar_lea.vmem [#allocation9], %s276
        %s278 = smul.u32 4, %s26
        %s279 = smul.u32 6, %s28
        %s280 = smul.u32 91, %s28
        %s281 = smul.u32 2, %s27
        %s282 = smul.u32 2, %s27
        %s283 = smul.u32 4, %s26
        %s284 = smul.u32 2, %s27
        %p286 = scmp.eq.s32.totalorder %s28, 0
        // Predicated region
        $region45: #{tpu_custom_call.1} parent=31 // pred_check
          %p287 = pneg %p286
        $region46: #{tpu_custom_call.1} parent=31 // pred_check_branch
          %289 = sbr.rel (%p287) target = $region48
        $region47: #{tpu_custom_call.1} parent=31 // pred_region
          %290 = vst [vmem:[#allocation2] sm:$0xff] 0.0
          %291 = vst [vmem:[#allocation2 + $0x8] sm:$0xff] 0.0
          %292 = vst [vmem:[#allocation2 + $0x10] sm:$0xff] 0.0
          %293 = vst [vmem:[#allocation2 + $0x18] sm:$0xff] 0.0
          %294 = vst [vmem:[#allocation2 + $0x20] sm:$0xff] 0.0
          %295 = vst [vmem:[#allocation2 + $0x28] sm:$0xff] 0.0
          %296 = vst [vmem:[#allocation2 + $0x30] sm:$0xff] 0.0
          %297 = vst [vmem:[#allocation2 + $0x38] sm:$0xff] 0.0
        $region48: #{tpu_custom_call.1} parent=31 // pred_fallthru
          _
        %v298 = vld [vmem:[#allocation3] sm:$0xff]
        %v299 = vld [vmem:[#allocation3 + $0x8] sm:$0xff]
        %v300 = vld [vmem:[#allocation3 + $0x10] sm:$0xff]
        %v301 = vld [vmem:[#allocation3 + $0x18] sm:$0xff]
        %v302 = vld [vmem:[#allocation3 + $0x20] sm:$0xff]
        %v303 = vld [vmem:[#allocation3 + $0x28] sm:$0xff]
        %v304 = vld [vmem:[#allocation3 + $0x30] sm:$0xff]
        %v305 = vld [vmem:[#allocation3 + $0x38] sm:$0xff]
        %v306 = vld [vmem:[#allocation3 + $0x40] sm:$0xff]
        %v307 = vld [vmem:[#allocation3 + $0x48] sm:$0xff]
        %v308 = vld [vmem:[#allocation3 + $0x50] sm:$0xff]
        %v309 = vld [vmem:[#allocation3 + $0x58] sm:$0xff]
        %v310 = vld [vmem:[#allocation3 + $0x60] sm:$0xff]
        %v311 = vld [vmem:[#allocation3 + $0x68] sm:$0xff]
        %v312 = vld [vmem:[#allocation3 + $0x70] sm:$0xff]
        %v313 = vld [vmem:[#allocation3 + $0x78] sm:$0xff]
        %v314 = vld [vmem:[#allocation3 + $0x80] sm:$0xff]
        %v315 = vld [vmem:[#allocation3 + $0x88] sm:$0xff]
        %v316 = vld [vmem:[#allocation3 + $0x90] sm:$0xff]
        %v317 = vld [vmem:[#allocation3 + $0x98] sm:$0xff]
        %v318 = vld [vmem:[#allocation3 + $0xa0] sm:$0xff]
        %v319 = vld [vmem:[#allocation3 + $0xa8] sm:$0xff]
        %v320 = vld [vmem:[#allocation3 + $0xb0] sm:$0xff]
        %v321 = vld [vmem:[#allocation3 + $0xb8] sm:$0xff]
        %v322 = vld [vmem:[#allocation2] sm:$0xff]
        %v323 = vld [vmem:[#allocation2 + $0x8] sm:$0xff]
        %v324 = vld [vmem:[#allocation2 + $0x10] sm:$0xff]
        %v325 = vld [vmem:[#allocation2 + $0x18] sm:$0xff]
        %v326 = vld [vmem:[#allocation2 + $0x20] sm:$0xff]
        %v327 = vld [vmem:[#allocation2 + $0x28] sm:$0xff]
        %v328 = vld [vmem:[#allocation2 + $0x30] sm:$0xff]
        %v329 = vld [vmem:[#allocation2 + $0x38] sm:$0xff]
        %v330 = vpack.c.bf16 %v304, %v298
        %v331 = vpack.c.bf16 %v305, %v299
        %v332 = vpack.c.bf16 %v306, %v300
        %v333 = vpack.c.bf16 %v307, %v301
        %v334 = vpack.c.bf16 %v308, %v302
        %v335 = vpack.c.bf16 %v309, %v303
        %v336 = vpack.c.bf16 %v316, %v310
        %v337 = vpack.c.bf16 %v317, %v311
        %v338 = vpack.c.bf16 %v318, %v312
        %v339 = vpack.c.bf16 %v319, %v313
        %v340 = vpack.c.bf16 %v320, %v314
        %v341 = vpack.c.bf16 %v321, %v315
        %v342 = vld [vmem:[%s241] sm:$0xff]
        %v343 = vld [vmem:[%s241 + $0x8] sm:$0xff]
        %v344 = vld [vmem:[%s241 + $0x10] sm:$0xff]
        %v345 = vld [vmem:[%s241 + $0x18] sm:$0xff]
        %v346 = vld [vmem:[%s241 + $0x20] sm:$0xff]
        %v347 = vld [vmem:[%s241 + $0x28] sm:$0xff]
        %v348 = vld [vmem:[%s241 + $0x30] sm:$0xff]
        %v349 = vld [vmem:[%s241 + $0x38] sm:$0xff]
        %v350 = vld [vmem:[%s241 + $0x40] sm:$0xff]
        %v351 = vld [vmem:[%s241 + $0x48] sm:$0xff]
        %v352 = vld [vmem:[%s241 + $0x50] sm:$0xff]
        %v353 = vld [vmem:[%s241 + $0x58] sm:$0xff]
        %v354 = vld [vmem:[%s241 + $0x60] sm:$0xff]
        %v355 = vld [vmem:[%s241 + $0x68] sm:$0xff]
        %v356 = vld [vmem:[%s241 + $0x70] sm:$0xff]
        %v357 = vld [vmem:[%s241 + $0x78] sm:$0xff]
        %v358 = vld [vmem:[%s241 + $0x80] sm:$0xff]
        %v359 = vld [vmem:[%s241 + $0x88] sm:$0xff]
        %v360 = vld [vmem:[%s241 + $0x90] sm:$0xff]
        %v361 = vld [vmem:[%s241 + $0x98] sm:$0xff]
        %v362 = vld [vmem:[%s241 + $0xa0] sm:$0xff]
        %v363 = vld [vmem:[%s241 + $0xa8] sm:$0xff]
        %v364 = vld [vmem:[%s241 + $0xb0] sm:$0xff]
        %v365 = vld [vmem:[%s241 + $0xb8] sm:$0xff]
        %v366 = vld [vmem:[%s241 + $0xc0] sm:$0xff]
        %v367 = vld [vmem:[%s241 + $0xc8] sm:$0xff]
        %v368 = vld [vmem:[%s241 + $0xd0] sm:$0xff]
        %v369 = vld [vmem:[%s241 + $0xd8] sm:$0xff]
        %v370 = vld [vmem:[%s241 + $0xe0] sm:$0xff]
        %v371 = vld [vmem:[%s241 + $0xe8] sm:$0xff]
        %v372 = vld [vmem:[%s241 + $0xf0] sm:$0xff]
        %v373 = vld [vmem:[%s241 + $0xf8] sm:$0xff]
        %v374 = vld [vmem:[%s241 + $0x100] sm:$0xff]
        %v375 = vld [vmem:[%s241 + $0x108] sm:$0xff]
        %v376 = vld [vmem:[%s241 + $0x110] sm:$0xff]
        %v377 = vld [vmem:[%s241 + $0x118] sm:$0xff]
        %v378 = vld [vmem:[%s241 + $0x120] sm:$0xff]
        %v379 = vld [vmem:[%s241 + $0x128] sm:$0xff]
        %v380 = vld [vmem:[%s241 + $0x130] sm:$0xff]
        %v381 = vld [vmem:[%s241 + $0x138] sm:$0xff]
        %v382 = vld [vmem:[%s241 + $0x140] sm:$0xff]
        %v383 = vld [vmem:[%s241 + $0x148] sm:$0xff]
        %v384 = vld [vmem:[%s241 + $0x150] sm:$0xff]
        %v385 = vld [vmem:[%s241 + $0x158] sm:$0xff]
        %v386 = vld [vmem:[%s241 + $0x160] sm:$0xff]
        %v387 = vld [vmem:[%s241 + $0x168] sm:$0xff]
        %v388 = vld [vmem:[%s241 + $0x170] sm:$0xff]
        %v389 = vld [vmem:[%s241 + $0x178] sm:$0xff]
        %v390 = vld [vmem:[%s241 + $0x180] sm:$0xff]
        %v391 = vld [vmem:[%s241 + $0x188] sm:$0xff]
        %v392 = vld [vmem:[%s241 + $0x190] sm:$0xff]
        %v393 = vld [vmem:[%s241 + $0x198] sm:$0xff]
        %v394 = vld [vmem:[%s241 + $0x1a0] sm:$0xff]
        %v395 = vld [vmem:[%s241 + $0x1a8] sm:$0xff]
        %v396 = vld [vmem:[%s241 + $0x1b0] sm:$0xff]
        %v397 = vld [vmem:[%s241 + $0x1b8] sm:$0xff]
        %v398 = vld [vmem:[%s241 + $0x1c0] sm:$0xff]
        %v399 = vld [vmem:[%s241 + $0x1c8] sm:$0xff]
        %v400 = vld [vmem:[%s241 + $0x1d0] sm:$0xff]
        %v401 = vld [vmem:[%s241 + $0x1d8] sm:$0xff]
        %v402 = vld [vmem:[%s241 + $0x1e0] sm:$0xff]
        %v403 = vld [vmem:[%s241 + $0x1e8] sm:$0xff]
        %v404 = vld [vmem:[%s241 + $0x1f0] sm:$0xff]
        %v405 = vld [vmem:[%s241 + $0x1f8] sm:$0xff]
        %v406 = vld [vmem:[%s241 + $0x200] sm:$0xff]
        %v407 = vld [vmem:[%s241 + $0x208] sm:$0xff]
        %v408 = vld [vmem:[%s241 + $0x210] sm:$0xff]
        %v409 = vld [vmem:[%s241 + $0x218] sm:$0xff]
        %v410 = vld [vmem:[%s241 + $0x220] sm:$0xff]
        %v411 = vld [vmem:[%s241 + $0x228] sm:$0xff]
        %v412 = vld [vmem:[%s241 + $0x230] sm:$0xff]
        %v413 = vld [vmem:[%s241 + $0x238] sm:$0xff]
        %v414 = vld [vmem:[%s241 + $0x240] sm:$0xff]
        %v415 = vld [vmem:[%s241 + $0x248] sm:$0xff]
        %v416 = vld [vmem:[%s241 + $0x250] sm:$0xff]
        %v417 = vld [vmem:[%s241 + $0x258] sm:$0xff]
        %v418 = vld [vmem:[%s241 + $0x260] sm:$0xff]
        %v419 = vld [vmem:[%s241 + $0x268] sm:$0xff]
        %v420 = vld [vmem:[%s241 + $0x270] sm:$0xff]
        %v421 = vld [vmem:[%s241 + $0x278] sm:$0xff]
        %v422 = vld [vmem:[%s241 + $0x280] sm:$0xff]
        %v423 = vld [vmem:[%s241 + $0x288] sm:$0xff]
        %v424 = vld [vmem:[%s241 + $0x290] sm:$0xff]
        %v425 = vld [vmem:[%s241 + $0x298] sm:$0xff]
        %v426 = vld [vmem:[%s241 + $0x2a0] sm:$0xff]
        %v427 = vld [vmem:[%s241 + $0x2a8] sm:$0xff]
        %v428 = vld [vmem:[%s241 + $0x2b0] sm:$0xff]
        %v429 = vld [vmem:[%s241 + $0x2b8] sm:$0xff]
        %v430 = vld [vmem:[%s241 + $0x2c0] sm:$0xff]
        %v431 = vld [vmem:[%s241 + $0x2c8] sm:$0xff]
        %v432 = vld [vmem:[%s241 + $0x2d0] sm:$0xff]
        %v524 = vunpack.c.l.b16 %v342
        %v525 = vunpack.c.h.b16 %v342
        %v526 = vunpack.c.l.b16 %v343
        %v527 = vunpack.c.h.b16 %v343
        %v528 = vunpack.c.l.b16 %v344
        %v529 = vunpack.c.h.b16 %v344
        %v530 = vunpack.c.l.b16 %v345
        %v531 = vunpack.c.h.b16 %v345
        %v532 = vunpack.c.l.b16 %v346
        %v533 = vunpack.c.h.b16 %v346
        %v534 = vunpack.c.l.b16 %v347
        %v535 = vunpack.c.h.b16 %v347
        %v536 = vunpack.c.l.b16 %v348
        %v537 = vunpack.c.h.b16 %v348
        %v538 = vunpack.c.l.b16 %v349
        %v539 = vunpack.c.h.b16 %v349
        %v540 = vunpack.c.l.b16 %v350
        %v541 = vunpack.c.h.b16 %v350
        %v542 = vunpack.c.l.b16 %v351
        %v543 = vunpack.c.h.b16 %v351
        %v544 = vunpack.c.l.b16 %v352
        %v545 = vunpack.c.h.b16 %v352
        %v546 = vunpack.c.l.b16 %v353
        %v547 = vunpack.c.h.b16 %v353
        %v548 = vunpack.c.l.b16 %v354
        %v549 = vunpack.c.h.b16 %v354
        %v550 = vunpack.c.l.b16 %v355
        %v551 = vunpack.c.h.b16 %v355
        %v552 = vunpack.c.l.b16 %v356
        %v553 = vunpack.c.h.b16 %v356
        %v554 = vunpack.c.l.b16 %v357
        %v555 = vunpack.c.h.b16 %v357
        %v556 = vunpack.c.l.b16 %v358
        %v557 = vunpack.c.h.b16 %v358
        %v558 = vunpack.c.l.b16 %v359
        %v559 = vunpack.c.h.b16 %v359
        %v560 = vunpack.c.l.b16 %v360
        %v561 = vunpack.c.h.b16 %v360
        %v562 = vunpack.c.l.b16 %v361
        %v563 = vunpack.c.h.b16 %v361
        %v564 = vunpack.c.l.b16 %v362
        %v565 = vunpack.c.h.b16 %v362
        %v566 = vunpack.c.l.b16 %v363
        %v567 = vunpack.c.h.b16 %v363
        %v568 = vunpack.c.l.b16 %v364
        %v569 = vunpack.c.h.b16 %v364
        %v570 = vunpack.c.l.b16 %v365
        %v571 = vunpack.c.h.b16 %v365
        %v572 = vunpack.c.l.b16 %v366
        %v573 = vunpack.c.h.b16 %v366
        %v574 = vunpack.c.l.b16 %v367
        %v575 = vunpack.c.h.b16 %v367
        %v576 = vunpack.c.l.b16 %v368
        %v577 = vunpack.c.h.b16 %v368
        %v578 = vunpack.c.l.b16 %v369
        %v579 = vunpack.c.h.b16 %v369
        %v580 = vunpack.c.l.b16 %v370
        %v581 = vunpack.c.h.b16 %v370
        %v582 = vunpack.c.l.b16 %v371
        %v583 = vunpack.c.h.b16 %v371
        %v584 = vunpack.c.l.b16 %v372
        %v585 = vunpack.c.h.b16 %v372
        %v586 = vunpack.c.l.b16 %v373
        %v587 = vunpack.c.h.b16 %v373
        %v588 = vunpack.c.l.b16 %v374
        %v589 = vunpack.c.h.b16 %v374
        %v590 = vunpack.c.l.b16 %v375
        %v591 = vunpack.c.h.b16 %v375
        %v592 = vunpack.c.l.b16 %v376
        %v593 = vunpack.c.h.b16 %v376
        %v594 = vunpack.c.l.b16 %v377
        %v595 = vunpack.c.h.b16 %v377
        %v596 = vunpack.c.l.b16 %v378
        %v597 = vunpack.c.h.b16 %v378
        %v598 = vunpack.c.l.b16 %v379
        %v599 = vunpack.c.h.b16 %v379
        %v600 = vunpack.c.l.b16 %v380
        %v601 = vunpack.c.h.b16 %v380
        %v602 = vunpack.c.l.b16 %v381
        %v603 = vunpack.c.h.b16 %v381
        %v604 = vunpack.c.l.b16 %v382
        %v605 = vunpack.c.h.b16 %v382
        %v606 = vunpack.c.l.b16 %v383
        %v607 = vunpack.c.h.b16 %v383
        %v608 = vunpack.c.l.b16 %v384
        %v609 = vunpack.c.h.b16 %v384
        %v610 = vunpack.c.l.b16 %v385
        %v611 = vunpack.c.h.b16 %v385
        %v612 = vunpack.c.l.b16 %v386
        %v613 = vunpack.c.h.b16 %v386
        %v614 = vunpack.c.l.b16 %v387
        %v615 = vunpack.c.h.b16 %v387
        %v616 = vunpack.c.l.b16 %v388
        %v617 = vunpack.c.h.b16 %v388
        %v618 = vunpack.c.l.b16 %v389
        %v619 = vunpack.c.h.b16 %v389
        %v620 = vunpack.c.l.b16 %v390
        %v621 = vunpack.c.h.b16 %v390
        %v622 = vunpack.c.l.b16 %v391
        %v623 = vunpack.c.h.b16 %v391
        %v624 = vunpack.c.l.b16 %v392
        %v625 = vunpack.c.h.b16 %v392
        %v626 = vunpack.c.l.b16 %v393
        %v627 = vunpack.c.h.b16 %v393
        %v628 = vunpack.c.l.b16 %v394
        %v629 = vunpack.c.h.b16 %v394
        %v630 = vunpack.c.l.b16 %v395
        %v631 = vunpack.c.h.b16 %v395
        %v632 = vunpack.c.l.b16 %v396
        %v633 = vunpack.c.h.b16 %v396
        %v634 = vunpack.c.l.b16 %v397
        %v635 = vunpack.c.h.b16 %v397
        %v636 = vunpack.c.l.b16 %v398
        %v637 = vunpack.c.h.b16 %v398
        %v638 = vunpack.c.l.b16 %v399
        %v639 = vunpack.c.h.b16 %v399
        %v640 = vunpack.c.l.b16 %v400
        %v641 = vunpack.c.h.b16 %v400
        %v642 = vunpack.c.l.b16 %v401
        %v643 = vunpack.c.h.b16 %v401
        %v644 = vunpack.c.l.b16 %v402
        %v645 = vunpack.c.h.b16 %v402
        %v646 = vunpack.c.l.b16 %v403
        %v647 = vunpack.c.h.b16 %v403
        %v648 = vunpack.c.l.b16 %v404
        %v649 = vunpack.c.h.b16 %v404
        %v650 = vunpack.c.l.b16 %v405
        %v651 = vunpack.c.h.b16 %v405
        %v652 = vunpack.c.l.b16 %v406
        %v653 = vunpack.c.h.b16 %v406
        %v654 = vunpack.c.l.b16 %v407
        %v655 = vunpack.c.h.b16 %v407
        %v656 = vunpack.c.l.b16 %v408
        %v657 = vunpack.c.h.b16 %v408
        %v658 = vunpack.c.l.b16 %v409
        %v659 = vunpack.c.h.b16 %v409
        %v660 = vunpack.c.l.b16 %v410
        %v661 = vunpack.c.h.b16 %v410
        %v662 = vunpack.c.l.b16 %v411
        %v663 = vunpack.c.h.b16 %v411
        %v664 = vunpack.c.l.b16 %v412
        %v665 = vunpack.c.h.b16 %v412
        %v666 = vunpack.c.l.b16 %v413
        %v667 = vunpack.c.h.b16 %v413
        %v668 = vunpack.c.l.b16 %v414
        %v669 = vunpack.c.h.b16 %v414
        %v670 = vunpack.c.l.b16 %v415
        %v671 = vunpack.c.h.b16 %v415
        %v672 = vunpack.c.l.b16 %v416
        %v673 = vunpack.c.h.b16 %v416
        %v674 = vunpack.c.l.b16 %v417
        %v675 = vunpack.c.h.b16 %v417
        %v676 = vunpack.c.l.b16 %v418
        %v677 = vunpack.c.h.b16 %v418
        %v678 = vunpack.c.l.b16 %v419
        %v679 = vunpack.c.h.b16 %v419
        %v680 = vunpack.c.l.b16 %v420
        %v681 = vunpack.c.h.b16 %v420
        %v682 = vunpack.c.l.b16 %v421
        %v683 = vunpack.c.h.b16 %v421
        %v684 = vunpack.c.l.b16 %v422
        %v685 = vunpack.c.h.b16 %v422
        %v686 = vunpack.c.l.b16 %v423
        %v687 = vunpack.c.h.b16 %v423
        %v688 = vunpack.c.l.b16 %v424
        %v689 = vunpack.c.h.b16 %v424
        %v690 = vunpack.c.l.b16 %v425
        %v691 = vunpack.c.h.b16 %v425
        %v692 = vunpack.c.l.b16 %v426
        %v693 = vunpack.c.h.b16 %v426
        %v694 = vunpack.c.l.b16 %v427
        %v695 = vunpack.c.h.b16 %v427
        %v696 = vunpack.c.l.b16 %v428
        %v697 = vunpack.c.h.b16 %v428
        %v698 = vunpack.c.l.b16 %v429
        %v699 = vunpack.c.h.b16 %v429
        %v700 = vunpack.c.l.b16 %v430
        %v701 = vunpack.c.h.b16 %v430
        %v702 = vunpack.c.l.b16 %v431
        %v703 = vunpack.c.h.b16 %v431
        %v704 = vunpack.c.l.b16 %v432
        %v705 = vunpack.c.h.b16 %v432
        %v706 = vpack.c.b16 %v526, %v524
        %v707 = vpack.c.b16 %v527, %v525
        %v708 = vpack.c.b16 %v530, %v528
        %v709 = vpack.c.b16 %v531, %v529
        %v710 = vpack.c.b16 %v534, %v532
        %v711 = vpack.c.b16 %v535, %v533
        %v712 = vpack.c.b16 %v538, %v536
        %v713 = vpack.c.b16 %v539, %v537
        %v714 = vpack.c.b16 %v542, %v540
        %v715 = vpack.c.b16 %v543, %v541
        %v716 = vpack.c.b16 %v546, %v544
        %v717 = vpack.c.b16 %v547, %v545
        %v718 = vpack.c.b16 %v550, %v548
        %v719 = vpack.c.b16 %v551, %v549
        %v720 = vpack.c.b16 %v554, %v552
        %v721 = vpack.c.b16 %v555, %v553
        %v722 = vpack.c.b16 %v558, %v556
        %v723 = vpack.c.b16 %v559, %v557
        %v724 = vpack.c.b16 %v562, %v560
        %v725 = vpack.c.b16 %v563, %v561
        %v726 = vpack.c.b16 %v566, %v564
        %v727 = vpack.c.b16 %v567, %v565
        %v728 = vpack.c.b16 %v570, %v568
        %v729 = vpack.c.b16 %v571, %v569
        %v730 = vpack.c.b16 %v574, %v572
        %v731 = vpack.c.b16 %v575, %v573
        %v732 = vpack.c.b16 %v578, %v576
        %v733 = vpack.c.b16 %v579, %v577
        %v734 = vpack.c.b16 %v582, %v580
        %v735 = vpack.c.b16 %v583, %v581
        %v736 = vpack.c.b16 %v586, %v584
        %v737 = vpack.c.b16 %v587, %v585
        %v738 = vpack.c.b16 %v590, %v588
        %v739 = vpack.c.b16 %v591, %v589
        %v740 = vpack.c.b16 %v594, %v592
        %v741 = vpack.c.b16 %v595, %v593
        %v742 = vpack.c.b16 %v598, %v596
        %v743 = vpack.c.b16 %v599, %v597
        %v744 = vpack.c.b16 %v602, %v600
        %v745 = vpack.c.b16 %v603, %v601
        %v746 = vpack.c.b16 %v606, %v604
        %v747 = vpack.c.b16 %v607, %v605
        %v748 = vpack.c.b16 %v610, %v608
        %v749 = vpack.c.b16 %v611, %v609
        %v750 = vpack.c.b16 %v614, %v612
        %v751 = vpack.c.b16 %v615, %v613
        %v752 = vpack.c.b16 %v618, %v616
        %v753 = vpack.c.b16 %v619, %v617
        %v754 = vpack.c.b16 %v622, %v620
        %v755 = vpack.c.b16 %v623, %v621
        %v756 = vpack.c.b16 %v626, %v624
        %v757 = vpack.c.b16 %v627, %v625
        %v758 = vpack.c.b16 %v630, %v628
        %v759 = vpack.c.b16 %v631, %v629
        %v760 = vpack.c.b16 %v634, %v632
        %v761 = vpack.c.b16 %v635, %v633
        %v762 = vpack.c.b16 %v638, %v636
        %v763 = vpack.c.b16 %v639, %v637
        %v764 = vpack.c.b16 %v642, %v640
        %v765 = vpack.c.b16 %v643, %v641
        %v766 = vpack.c.b16 %v646, %v644
        %v767 = vpack.c.b16 %v647, %v645
        %v768 = vpack.c.b16 %v650, %v648
        %v769 = vpack.c.b16 %v651, %v649
        %v770 = vpack.c.b16 %v654, %v652
        %v771 = vpack.c.b16 %v655, %v653
        %v772 = vpack.c.b16 %v658, %v656
        %v773 = vpack.c.b16 %v659, %v657
        %v774 = vpack.c.b16 %v662, %v660
        %v775 = vpack.c.b16 %v663, %v661
        %v776 = vpack.c.b16 %v666, %v664
        %v777 = vpack.c.b16 %v667, %v665
        %v778 = vpack.c.b16 %v670, %v668
        %v779 = vpack.c.b16 %v671, %v669
        %v780 = vpack.c.b16 %v674, %v672
        %v781 = vpack.c.b16 %v675, %v673
        %v782 = vpack.c.b16 %v678, %v676
        %v783 = vpack.c.b16 %v679, %v677
        %v784 = vpack.c.b16 %v682, %v680
        %v785 = vpack.c.b16 %v683, %v681
        %v786 = vpack.c.b16 %v686, %v684
        %v787 = vpack.c.b16 %v687, %v685
        %v788 = vpack.c.b16 %v690, %v688
        %v789 = vpack.c.b16 %v691, %v689
        %v790 = vpack.c.b16 %v694, %v692
        %v791 = vpack.c.b16 %v695, %v693
        %v792 = vpack.c.b16 %v698, %v696
        %v793 = vpack.c.b16 %v699, %v697
        %v794 = vpack.c.b16 %v702, %v700
        %v795 = vpack.c.b16 %v703, %v701
        %v796 = vpack.c.b16 %v704, %v704
        %v797 = vpack.c.b16 %v705, %v705
        %vm888 = vcmask 719872
        %v890 = vsel %vm888, %v335, 0
        %v893 = vsel %vm888, %v341, 0
        %vm895 = vcmask 1043456
        %v897 = vsel %vm895, %v796, 0
        %v900 = vsel %vm895, %v797, 0
        %902 = vmatprep.subr.bf16.mxu0 %v707
        %903 = vmatpush1.bf16.msra.mxu0 %v706
        %904 = vmatprep.subr.bf16.mxu0 %v709
        %905 = vmatpush1.bf16.msra.mxu0 %v708
        %906 = vmatprep.subr.bf16.mxu0 %v711
        %907 = vmatpush1.bf16.msra.mxu0 %v710
        %908 = vmatprep.subr.bf16.mxu0 %v713
        %909 = vmatpush1.bf16.msra.mxu0 %v712
        %910 = vmatprep.subr.bf16.mxu0 %v715
        %911 = vmatpush1.bf16.msra.mxu0 %v714
        %912 = vmatprep.subr.bf16.mxu0 %v717
        %913 = vmatpush1.bf16.msra.mxu0 %v716
        %914 = vmatprep.subr.bf16.mxu0 %v719
        %915 = vmatpush1.bf16.msra.mxu0 %v718
        %916 = vmatprep.subr.bf16.mxu0 %v721
        %917 = vmatpush1.bf16.msra.mxu0 %v720
        %918 = vmatprep.subr.bf16.mxu0 %v723
        %919 = vmatpush1.bf16.msra.mxu0 %v722
        %920 = vmatprep.subr.bf16.mxu0 %v725
        %921 = vmatpush1.bf16.msra.mxu0 %v724
        %922 = vmatprep.subr.bf16.mxu0 %v727
        %923 = vmatpush1.bf16.msra.mxu0 %v726
        %924 = vmatprep.subr.bf16.mxu0 %v729
        %925 = vmatpush1.bf16.msra.mxu0 %v728
        %926 = vmatprep.subr.bf16.mxu0 %v731
        %927 = vmatpush1.bf16.msra.mxu0 %v730
        %928 = vmatprep.subr.bf16.mxu0 %v733
        %929 = vmatpush1.bf16.msra.mxu0 %v732
        %930 = vmatprep.subr.bf16.mxu0 %v735
        %931 = vmatpush1.bf16.msra.mxu0 %v734
        %932 = vmatprep.subr.bf16.mxu0 %v737
        %933 = vmatpush1.bf16.msra.mxu0 %v736
        %934 = vmatprep.mubr.bf16.mxu0 %v331
        %935 = vmatmul.mubr.bf16.gmra.mrb[0].mxu0 %v330
        %v936 = vpop.f32.mrb[0].mxu0
        %v937 = vadd.f32 0.0, %v936
        %v938 = vpop.f32.mrb[0].mxu0
        %v939 = vadd.f32 0.0, %v938
        %v940 = vpop.f32.mrb[0].mxu0
        %v941 = vadd.f32 0.0, %v940
        %v942 = vpop.f32.mrb[0].mxu0
        %v943 = vadd.f32 0.0, %v942
        %944 = vmatprep.mubr.bf16.mxu0 %v337
        %945 = vmatmul.mubr.bf16.gmra.mrb[0].mxu0 %v336
        %v946 = vpop.f32.mrb[0].mxu0
        %v947 = vadd.f32 0.0, %v946
        %v948 = vpop.f32.mrb[0].mxu0
        %v949 = vadd.f32 0.0, %v948
        %v950 = vpop.f32.mrb[0].mxu0
        %v951 = vadd.f32 0.0, %v950
        %v952 = vpop.f32.mrb[0].mxu0
        %v953 = vadd.f32 0.0, %v952
        %954 = vdwg.mxu0
        %955 = vmatprep.subr.bf16.mxu0 %v739
        %956 = vmatpush1.bf16.msra.mxu0 %v738
        %957 = vmatprep.subr.bf16.mxu0 %v741
        %958 = vmatpush1.bf16.msra.mxu0 %v740
        %959 = vmatprep.subr.bf16.mxu0 %v743
        %960 = vmatpush1.bf16.msra.mxu0 %v742
        %961 = vmatprep.subr.bf16.mxu0 %v745
        %962 = vmatpush1.bf16.msra.mxu0 %v744
        %963 = vmatprep.subr.bf16.mxu0 %v747
        %964 = vmatpush1.bf16.msra.mxu0 %v746
        %965 = vmatprep.subr.bf16.mxu0 %v749
        %966 = vmatpush1.bf16.msra.mxu0 %v748
        %967 = vmatprep.subr.bf16.mxu0 %v751
        %968 = vmatpush1.bf16.msra.mxu0 %v750
        %969 = vmatprep.subr.bf16.mxu0 %v753
        %970 = vmatpush1.bf16.msra.mxu0 %v752
        %971 = vmatprep.subr.bf16.mxu0 %v755
        %972 = vmatpush1.bf16.msra.mxu0 %v754
        %973 = vmatprep.subr.bf16.mxu0 %v757
        %974 = vmatpush1.bf16.msra.mxu0 %v756
        %975 = vmatprep.subr.bf16.mxu0 %v759
        %976 = vmatpush1.bf16.msra.mxu0 %v758
        %977 = vmatprep.subr.bf16.mxu0 %v761
        %978 = vmatpush1.bf16.msra.mxu0 %v760
        %979 = vmatprep.subr.bf16.mxu0 %v763
        %980 = vmatpush1.bf16.msra.mxu0 %v762
        %981 = vmatprep.subr.bf16.mxu0 %v765
        %982 = vmatpush1.bf16.msra.mxu0 %v764
        %983 = vmatprep.subr.bf16.mxu0 %v767
        %984 = vmatpush1.bf16.msra.mxu0 %v766
        %985 = vmatprep.subr.bf16.mxu0 %v769
        %986 = vmatpush1.bf16.msra.mxu0 %v768
        %987 = vmatprep.mubr.bf16.mxu0 %v333
        %988 = vmatmul.mubr.bf16.gmra.mrb[0].mxu0 %v332
        %v989 = vpop.f32.mrb[0].mxu0
        %v990 = vadd.f32 %v937, %v989
        %v991 = vpop.f32.mrb[0].mxu0
        %v992 = vadd.f32 %v939, %v991
        %v993 = vpop.f32.mrb[0].mxu0
        %v994 = vadd.f32 %v941, %v993
        %v995 = vpop.f32.mrb[0].mxu0
        %v996 = vadd.f32 %v943, %v995
        %997 = vmatprep.mubr.bf16.mxu0 %v339
        %998 = vmatmul.mubr.bf16.gmra.mrb[0].mxu0 %v338
        %v999 = vpop.f32.mrb[0].mxu0
        %v1000 = vadd.f32 %v947, %v999
        %v1001 = vpop.f32.mrb[0].mxu0
        %v1002 = vadd.f32 %v949, %v1001
        %v1003 = vpop.f32.mrb[0].mxu0
        %v1004 = vadd.f32 %v951, %v1003
        %v1005 = vpop.f32.mrb[0].mxu0
        %v1006 = vadd.f32 %v953, %v1005
        %1007 = vdwg.mxu0
        %1008 = vmatprep.subr.bf16.mxu0 %v771
        %1009 = vmatpush1.bf16.msra.mxu0 %v770
        %1010 = vmatprep.subr.bf16.mxu0 %v773
        %1011 = vmatpush1.bf16.msra.mxu0 %v772
        %1012 = vmatprep.subr.bf16.mxu0 %v775
        %1013 = vmatpush1.bf16.msra.mxu0 %v774
        %1014 = vmatprep.subr.bf16.mxu0 %v777
        %1015 = vmatpush1.bf16.msra.mxu0 %v776
        %1016 = vmatprep.subr.bf16.mxu0 %v779
        %1017 = vmatpush1.bf16.msra.mxu0 %v778
        %1018 = vmatprep.subr.bf16.mxu0 %v781
        %1019 = vmatpush1.bf16.msra.mxu0 %v780
        %1020 = vmatprep.subr.bf16.mxu0 %v783
        %1021 = vmatpush1.bf16.msra.mxu0 %v782
        %1022 = vmatprep.subr.bf16.mxu0 %v785
        %1023 = vmatpush1.bf16.msra.mxu0 %v784
        %1024 = vmatprep.subr.bf16.mxu0 %v787
        %1025 = vmatpush1.bf16.msra.mxu0 %v786
        %1026 = vmatprep.subr.bf16.mxu0 %v789
        %1027 = vmatpush1.bf16.msra.mxu0 %v788
        %1028 = vmatprep.subr.bf16.mxu0 %v791
        %1029 = vmatpush1.bf16.msra.mxu0 %v790
        %1030 = vmatprep.subr.bf16.mxu0 %v793
        %1031 = vmatpush1.bf16.msra.mxu0 %v792
        %1032 = vmatprep.subr.bf16.mxu0 %v795
        %1033 = vmatpush1.bf16.msra.mxu0 %v794
        %1034 = vmatprep.subr.bf16.mxu0 %v900
        %1035 = vmatpush1.bf16.msra.mxu0 %v897
        %1036 = vmatprep.subr.bf16.mxu0 0
        %1037 = vmatpush1.bf16.msra.mxu0 0
        %1038 = vmatprep.subr.bf16.mxu0 0
        %1039 = vmatpush1.bf16.msra.mxu0 0
        %1040 = vmatprep.mubr.bf16.mxu0 %v890
        %1041 = vmatmul.mubr.bf16.gmra.mrb[0].mxu0 %v334
        %v1042 = vpop.f32.mrb[0].mxu0
        %v1043 = vadd.f32 %v990, %v1042
        %v1044 = vpop.f32.mrb[0].mxu0
        %v1045 = vadd.f32 %v992, %v1044
        %v1046 = vpop.f32.mrb[0].mxu0
        %v1047 = vadd.f32 %v994, %v1046
        %v1048 = vpop.f32.mrb[0].mxu0
        %v1049 = vadd.f32 %v996, %v1048
        %1050 = vmatprep.mubr.bf16.mxu0 %v893
        %1051 = vmatmul.mubr.bf16.gmra.mrb[0].mxu0 %v340
        %v1052 = vpop.f32.mrb[0].mxu0
        %v1053 = vadd.f32 %v1000, %v1052
        %v1054 = vpop.f32.mrb[0].mxu0
        %v1055 = vadd.f32 %v1002, %v1054
        %v1056 = vpop.f32.mrb[0].mxu0
        %v1057 = vadd.f32 %v1004, %v1056
        %v1058 = vpop.f32.mrb[0].mxu0
        %v1059 = vadd.f32 %v1006, %v1058
        %1060 = vdwg.mxu0
        %v1061 = vadd.f32 %v322, %v1043
        %v1062 = vadd.f32 %v323, %v1045
        %v1063 = vadd.f32 %v324, %v1047
        %v1064 = vadd.f32 %v325, %v1049
        %v1065 = vadd.f32 %v326, %v1053
        %v1066 = vadd.f32 %v327, %v1055
        %v1067 = vadd.f32 %v328, %v1057
        %v1068 = vadd.f32 %v329, %v1059
        %1069 = vst [vmem:[#allocation2] sm:$0xff] %v1061
        %1070 = vst [vmem:[#allocation2 + $0x8] sm:$0xff] %v1062
        %1071 = vst [vmem:[#allocation2 + $0x10] sm:$0xff] %v1063
        %1072 = vst [vmem:[#allocation2 + $0x18] sm:$0xff] %v1064
        %1073 = vst [vmem:[#allocation2 + $0x20] sm:$0xff] %v1065
        %1074 = vst [vmem:[#allocation2 + $0x28] sm:$0xff] %v1066
        %1075 = vst [vmem:[#allocation2 + $0x30] sm:$0xff] %v1067
        %1076 = vst [vmem:[#allocation2 + $0x38] sm:$0xff] %v1068
        // Predicated region
        $region49: #{tpu_custom_call.1} parent=31 // pred_check
          %p1077 = pneg %p286
        $region50: #{tpu_custom_call.1} parent=31 // pred_check_branch
          %1079 = sbr.rel (%p1077) target = $region52
        $region51: #{tpu_custom_call.1} parent=31 // pred_region
          %v1080 = vld [vmem:[#allocation2] sm:$0xff]
          %v1081 = vld [vmem:[#allocation2 + $0x8] sm:$0xff]
          %v1082 = vld [vmem:[#allocation2 + $0x10] sm:$0xff]
          %v1083 = vld [vmem:[#allocation2 + $0x18] sm:$0xff]
          %v1084 = vld [vmem:[#allocation2 + $0x20] sm:$0xff]
          %v1085 = vld [vmem:[#allocation2 + $0x28] sm:$0xff]
          %v1086 = vld [vmem:[#allocation2 + $0x30] sm:$0xff]
          %v1087 = vld [vmem:[#allocation2 + $0x38] sm:$0xff]
          %v1088 = vld [vmem:[%s250] sm:$0x3]
          %v1090 = vlaneseq
          %v1091 = vshrl.u32 %v1090, 7
          %v1092 = vsub.s32 0, %v1091
          %v1093 = vrot.slane %v1088, %v1092
          %v1094 = vlaneseq
          %v1095 = vshrl.u32 %v1094, 7
          %v1096 = vsub.s32 1, %v1095
          %v1097 = vrot.slane %v1088, %v1096
          %v1100 = vadd.f32 %v1080, %v1093
          %v1101 = vadd.f32 %v1081, %v1097
          %v1102 = vadd.f32 %v1082, %v1093
          %v1103 = vadd.f32 %v1083, %v1097
          %v1104 = vadd.f32 %v1084, %v1093
          %v1105 = vadd.f32 %v1085, %v1097
          %v1106 = vadd.f32 %v1086, %v1093
          %v1107 = vadd.f32 %v1087, %v1097
          %1108 = vst [vmem:[%s277] sm:$0xff] %v1100
          %1109 = vst [vmem:[%s277 + $0x8] sm:$0xff] %v1101
          %1110 = vst [vmem:[%s277 + $0x10] sm:$0xff] %v1102
          %1111 = vst [vmem:[%s277 + $0x18] sm:$0xff] %v1103
          %1112 = vst [vmem:[%s277 + $0x20] sm:$0xff] %v1104
          %1113 = vst [vmem:[%s277 + $0x28] sm:$0xff] %v1105
          %1114 = vst [vmem:[%s277 + $0x30] sm:$0xff] %v1106
          %1115 = vst [vmem:[%s277 + $0x38] sm:$0xff] %v1107
        $region52: #{tpu_custom_call.1} parent=31 // pred_fallthru
          _
        %s1116 = sand.u32 %s132, 1
        %s1117 = scalar_lea.sflag [#allocation5], %s1116
        %s1118 = sand.u32 %s132, 1
        %s1119 = smul.addr %s1118, 64
        %s1120 = scalar_lea.vmem [#allocation9], %s1119
        // Predicated region
        $region53: #{tpu_custom_call.1} parent=31 // pred_check
          %p1121 = pneg %p142
        $region54: #{tpu_custom_call.1} parent=31 // pred_check_branch
          %1123 = sbr.rel (%p1121) target = $region56
        $region55: #{tpu_custom_call.1} parent=31 // pred_region
          %s1124 = smul.u32 4, %s26
          %s1125 = smul.u32 2, %s27
          %s1127 = ssub.s32 1024, 1024
          %1128 = vsyncadd %s1117, %s1127
          %s1129 = smul.addr %s1124, 8
          %s1130 = sadd.s32 %s1125, %s1129
          %s1131 = smul.addr %s1130, 128
          %s1132 = scalar_lea.hbm %s3, %s1131
          %s1133 = sshll.u32 %s1120, 4
          %s1134 = int_to_ptr.vmem [resolvable:$true] %s1133
          %1139 = dma.vmem_to_hbm [thread:$0]  %s1134, 1024, %s1132, %s1117, 256, 1024, 16
        $region56: #{tpu_custom_call.1} parent=31 // pred_fallthru
          _
      $region32: #{tpu_custom_call.1} parent=5 // pred_fallthru
        _
      %p1140 = scmp.le.s32.totalorder 2, %s16
      // Predicated region
      $region57: #{tpu_custom_call.1} parent=5 // pred_check
        %p1141 = pneg %p1140
      $region58: #{tpu_custom_call.1} parent=5 // pred_check_branch
        %1143 = sbr.rel (%p1141) target = $region60
      $region59: #{tpu_custom_call.1} parent=5 // pred_region
        %s1144 = ssub.s32 %s16, 2
        // Predicated region
        $region61: #{tpu_custom_call.1} parent=59 // pred_check
          %p1145 = pneg %p148
        $region62: #{tpu_custom_call.1} parent=59 // pred_check_branch
          %1147 = sbr.rel (%p1145) target = $region64
        $region63: #{tpu_custom_call.1} parent=59 // pred_region
          %s1148 = sand.u32 %s133, 1
          %s1149 = scalar_lea.sflag [#allocation5], %s1148
          %s1150 = sand.u32 %s133, 1
          %s1151 = smul.addr %s1150, 64
          %s1152 = scalar_lea.vmem [#allocation9], %s1151
          %1153 = dma.done %s1149, 1024
        $region64: #{tpu_custom_call.1} parent=59 // pred_fallthru
          _
      $region60: #{tpu_custom_call.1} parent=5 // pred_fallthru
        _
    $region6: #{tpu_custom_call.1} parent=1 // loop_footer
      %s20 = sadd.s32 1, %s16
    $region7: #{tpu_custom_call.1} parent=1 // loop_footer_branch
      %15 = sbr.rel target = $region3
    $region8: #{tpu_custom_call.1} parent=1 // loop_exit
      _
    %1154 = vsyncpa [#allocation4], 1
    %s1155 = scalar_lea.sflag [#allocation4], 1
    %1156 = vsyncpa %s1155, 1
    %1157 = vsyncpa [#allocation7], 1
    %s1158 = scalar_lea.sflag [#allocation7], 1
    %1159 = vsyncpa %s1158, 1
    %1160 = vsyncpa [#allocation5], 1
    %s1161 = scalar_lea.sflag [#allocation5], 1
    %1162 = vsyncpa %s1161, 1

</llo_original>
